<compile_context>
chip_gen: v7x
topology: tpu7x:2x2x1
jax: 0.10.0
libtpu: 0.0.40
codegen_flags: <defaults>
</compile_context>

<pallas_src>
import functools

import jax
import jax.numpy as jnp
from jax.experimental import pallas as pl
from jax.experimental.pallas import tpu as pltpu

LANE = 128      # TPU lane width; also the hidden size of the MLP.
SUBLANE = 8     # f32 sublane granularity.
HIDDEN = 128


def _round_up(x: int, m: int) -> int:
    return ((x + m - 1) // m) * m


def mlp_kernel(x_ref, w1_ref, b1_ref, w2_ref, b2_ref, w3_ref, b3_ref, o_ref):
    # x tile: (TM, state_size) f32 from HBM; cast to bf16 in-kernel (VPU op,
    # hidden under DMA/MXU slack).
    x = x_ref[...].astype(jnp.bfloat16)

    # fc1 + relu  (bf16 MXU inputs, f32 accumulate; bias/ReLU on f32 accumulator)
    h1 = jnp.dot(x, w1_ref[...], preferred_element_type=jnp.float32) + b1_ref[...]
    h1 = jnp.maximum(h1, 0.0).astype(jnp.bfloat16)

    # fc2 + relu
    h2 = jnp.dot(h1, w2_ref[...], preferred_element_type=jnp.float32) + b2_ref[...]
    h2 = jnp.maximum(h2, 0.0)  # keep f32 for the output layer

    # fc3 in full f32 (N = action_size is tiny; keeps Q-value ordering faithful)
    out = jnp.dot(h2, w3_ref[...], preferred_element_type=jnp.float32) + b3_ref[...]
    o_ref[...] = out.astype(o_ref.dtype)


def prepare_params(params):
    """One-time dtype preparation, done OUTSIDE the jitted forward.

    fc1/fc2 weights -> bf16 MXU operands, fc3 weight + all biases -> f32,
    biases as (1, out) rows for broadcast against the (TM, out) accumulator.
    """
    return {
        "w1": params["w1"].astype(jnp.bfloat16),
        "b1": params["b1"].astype(jnp.float32).reshape(1, -1),
        "w2": params["w2"].astype(jnp.bfloat16),
        "b2": params["b2"].astype(jnp.float32).reshape(1, -1),
        "w3": params["w3"].astype(jnp.float32),
        "b3": params["b3"].astype(jnp.float32).reshape(1, -1),
    }


@functools.partial(jax.jit, static_argnames=("tm_max",))
def simple_qnetwork_forward(x, prepared, *, tm_max: int = 1024):
    """x: (B, state_size) f32. prepared: output of prepare_params().

    Returns (B, action_size) f32 Q-values, matching the PyTorch module.
    """
    B, S = x.shape
    hidden = prepared["w1"].shape[1]            # 128
    action_size = prepared["w3"].shape[1]

    # Batch tile: aim for >= 4 grid steps (occupies both TCs on v7x via the
    # "parallel" batch axis), cap at tm_max (VMEM well under budget on all
    # generations), floor at the f32 sublane.
    TM = min(tm_max, max(SUBLANE, _round_up(-(-B // 4), SUBLANE)))
    grid = (pl.cdiv(B, TM),)

    # --- advisory cost estimate ----------------------------------------------
    flops = 2 * B * (S * hidden + hidden * hidden + hidden * action_size)
    bytes_accessed = (
        x.size * 4                                                   # x (f32 in)
        + (prepared["w1"].size + prepared["w2"].size) * 2            # bf16 weights
        + prepared["w3"].size * 4                                    # f32 fc3 weight
        + (prepared["b1"].size + prepared["b2"].size + prepared["b3"].size) * 4
        + B * action_size * 4                                        # output (f32)
    )
    cost = pl.CostEstimate(flops=flops, transcendentals=0,
                           bytes_accessed=bytes_accessed)

    resident = lambda i: (0, 0)   # weights/biases: same block every grid step
    out = pl.pallas_call(
        mlp_kernel,
        out_shape=jax.ShapeDtypeStruct((B, action_size), jnp.float32),
        grid_spec=pltpu.PrefetchScalarGridSpec(
            num_scalar_prefetch=0,
            grid=grid,
            in_specs=[
                pl.BlockSpec((TM, S), lambda i: (i, 0)),              # x tile (f32)
                pl.BlockSpec((S, hidden), resident),                  # w1 (bf16)
                pl.BlockSpec((1, hidden), resident),                  # b1 (f32)
                pl.BlockSpec((hidden, hidden), resident),             # w2 (bf16)
                pl.BlockSpec((1, hidden), resident),                  # b2 (f32)
                pl.BlockSpec((hidden, action_size), resident),        # w3 (f32)
                pl.BlockSpec((1, action_size), resident),             # b3 (f32)
            ],
            out_specs=pl.BlockSpec((TM, action_size), lambda i: (i, 0)),
        ),
        compiler_params=pltpu.CompilerParams(
            dimension_semantics=("parallel",),   # v7x: shard batch across TCs
        ),
        cost_estimate=cost,
    )(x, prepared["w1"], prepared["b1"], prepared["w2"], prepared["b2"],
      prepared["w3"], prepared["b3"])

    return out


def init_params(key, state_size, action_size):
    """Deterministic init mimicking PyTorch nn.Linear default (uniform +-1/sqrt(fan_in))."""
    def linear_init(k, fan_in, fan_out):
        kw, kb = jax.random.split(k)
        bound = 1.0 / jnp.sqrt(jnp.float32(fan_in))
        # stored as (in_features, out_features) == PyTorch weight transposed
        w = jax.random.uniform(kw, (fan_in, fan_out), jnp.float32, -bound, bound)
        b = jax.random.uniform(kb, (1, fan_out), jnp.float32, -bound, bound)
        return w, b

    k1, k2, k3 = jax.random.split(key, 3)
    w1, b1 = linear_init(k1, state_size, HIDDEN)
    w2, b2 = linear_init(k2, HIDDEN, HIDDEN)
    w3, b3 = linear_init(k3, HIDDEN, action_size)
    return {"w1": w1, "b1": b1, "w2": w2, "b2": b2, "w3": w3, "b3": b3}


def reference_forward(x, p):
    h1 = jnp.maximum(x @ p["w1"] + p["b1"], 0.0)
    h2 = jnp.maximum(h1 @ p["w2"] + p["b2"], 0.0)
    return h2 @ p["w3"] + p["b3"]


if __name__ == "__main__":
    key = jax.random.PRNGKey(0)
    k_param, k_x = jax.random.split(key)

    state_size = 16
    action_size = 4
    batch = 8

    params = init_params(k_param, state_size, action_size)
    prepared = prepare_params(params)          # one-time weight dtype prep
    x = jax.random.normal(k_x, (batch, state_size), jnp.float32)

    out = simple_qnetwork_forward(x, prepared)
    out = jax.block_until_ready(out)

    ref = reference_forward(x, params)
    assert out.shape == (batch, action_size), out.shape
    # bf16 fc1/fc2 matmul inputs (f32 accumulation, f32 fc3) -> loosened tolerance.
    assert jnp.allclose(out, ref, atol=5e-2, rtol=5e-2), "mismatch vs. reference"
    # Q-value ordering (what the DQN policy actually consumes) must match.
    assert jnp.array_equal(jnp.argmax(out, -1), jnp.argmax(ref, -1)), "argmax mismatch"

    print("KERNEL_OK")
</pallas_src>

<mosaic_0001>
module attributes {stable_mosaic.version = 11 : i64} {
  func.func @mlp_kernel(%arg0: i32, %arg1: memref<8x16xf32, #tpu.memory_space<vmem>>, %arg2: memref<16x128xbf16, #tpu.memory_space<vmem>>, %arg3: memref<1x128xf32, #tpu.memory_space<vmem>>, %arg4: memref<128x128xbf16, #tpu.memory_space<vmem>>, %arg5: memref<1x128xf32, #tpu.memory_space<vmem>>, %arg6: memref<128x4xf32, #tpu.memory_space<vmem>>, %arg7: memref<1x4xf32, #tpu.memory_space<vmem>>, %arg8: memref<8x4xf32, #tpu.memory_space<vmem>>) attributes {dimension_semantics = [#tpu.dimension_semantics<parallel>], iteration_bounds = array<i64: 1>, scalar_prefetch = 0 : i64, scratch_operands = 0 : i64, tpu.core_type = #tpu.core_type<tc>, window_params = [{transform_indices = @transform_0, window_bounds = array<i64: 8, 16>}, {pipeline_mode = #tpu.pipeline_mode<synchronous>, transform_indices = @transform_1, window_bounds = array<i64: 16, 128>}, {pipeline_mode = #tpu.pipeline_mode<synchronous>, transform_indices = @transform_2, window_bounds = array<i64: 1, 128>}, {pipeline_mode = #tpu.pipeline_mode<synchronous>, transform_indices = @transform_3, window_bounds = array<i64: 128, 128>}, {pipeline_mode = #tpu.pipeline_mode<synchronous>, transform_indices = @transform_4, window_bounds = array<i64: 1, 128>}, {pipeline_mode = #tpu.pipeline_mode<synchronous>, transform_indices = @transform_5, window_bounds = array<i64: 128, 4>}, {pipeline_mode = #tpu.pipeline_mode<synchronous>, transform_indices = @transform_6, window_bounds = array<i64: 1, 4>}, {transform_indices = @transform_7, window_bounds = array<i64: 8, 4>}]} {
    %c0 = arith.constant 0 : index
    %c0_0 = arith.constant 0 : index
    %0 = vector.load %arg1[%c0, %c0_0] : memref<8x16xf32, #tpu.memory_space<vmem>>, vector<8x16xf32>
    %1 = arith.truncf %0 : vector<8x16xf32> to vector<8x16xbf16>
    %c0_1 = arith.constant 0 : index
    %c0_2 = arith.constant 0 : index
    %2 = vector.load %arg2[%c0_1, %c0_2] : memref<16x128xbf16, #tpu.memory_space<vmem>>, vector<16x128xbf16>
    %cst = arith.constant dense<0.000000e+00> : vector<8x128xf32>
    %3 = tpu.matmul %1, %2, %cst {dimension_numbers = #tpu.dot_dimension_numbers<[1], [0], [0], [1], [0, 0, 1, 1], [], []>} : vector<8x16xbf16>, vector<16x128xbf16>, vector<8x128xf32> -> vector<8x128xf32>
    %c0_3 = arith.constant 0 : index
    %c0_4 = arith.constant 0 : index
    %4 = vector.load %arg3[%c0_3, %c0_4] : memref<1x128xf32, #tpu.memory_space<vmem>>, vector<1x128xf32>
    %5 = vector.broadcast %4 : vector<1x128xf32> to vector<8x128xf32>
    %6 = arith.addf %3, %5 : vector<8x128xf32>
    %cst_5 = arith.constant 0.000000e+00 : f32
    %7 = vector.broadcast %cst_5 : f32 to vector<8x128xf32>
    %8 = arith.maximumf %6, %7 : vector<8x128xf32>
    %9 = arith.truncf %8 : vector<8x128xf32> to vector<8x128xbf16>
    %c0_6 = arith.constant 0 : index
    %c0_7 = arith.constant 0 : index
    %10 = vector.load %arg4[%c0_6, %c0_7] : memref<128x128xbf16, #tpu.memory_space<vmem>>, vector<128x128xbf16>
    %cst_8 = arith.constant dense<0.000000e+00> : vector<8x128xf32>
    %11 = tpu.matmul %9, %10, %cst_8 {dimension_numbers = #tpu.dot_dimension_numbers<[1], [0], [0], [1], [0, 0, 1, 1], [], []>} : vector<8x128xbf16>, vector<128x128xbf16>, vector<8x128xf32> -> vector<8x128xf32>
    %c0_9 = arith.constant 0 : index
    %c0_10 = arith.constant 0 : index
    %12 = vector.load %arg5[%c0_9, %c0_10] : memref<1x128xf32, #tpu.memory_space<vmem>>, vector<1x128xf32>
    %13 = vector.broadcast %12 : vector<1x128xf32> to vector<8x128xf32>
    %14 = arith.addf %11, %13 : vector<8x128xf32>
    %cst_11 = arith.constant 0.000000e+00 : f32
    %15 = vector.broadcast %cst_11 : f32 to vector<8x128xf32>
    %16 = arith.maximumf %14, %15 : vector<8x128xf32>
    %c0_12 = arith.constant 0 : index
    %c0_13 = arith.constant 0 : index
    %17 = vector.load %arg6[%c0_12, %c0_13] : memref<128x4xf32, #tpu.memory_space<vmem>>, vector<128x4xf32>
    %cst_14 = arith.constant dense<0.000000e+00> : vector<8x4xf32>
    %18 = tpu.matmul %16, %17, %cst_14 {dimension_numbers = #tpu.dot_dimension_numbers<[1], [0], [0], [1], [0, 0, 1, 1], [], []>} : vector<8x128xf32>, vector<128x4xf32>, vector<8x4xf32> -> vector<8x4xf32>
    %c0_15 = arith.constant 0 : index
    %c0_16 = arith.constant 0 : index
    %19 = vector.load %arg7[%c0_15, %c0_16] : memref<1x4xf32, #tpu.memory_space<vmem>>, vector<1x4xf32>
    %20 = vector.broadcast %19 : vector<1x4xf32> to vector<8x4xf32>
    %21 = arith.addf %18, %20 : vector<8x4xf32>
    %c0_17 = arith.constant 0 : index
    %c0_18 = arith.constant 0 : index
    %22 = vector.load %arg8[%c0_17, %c0_18] : memref<8x4xf32, #tpu.memory_space<vmem>>, vector<8x4xf32>
    tpu.vector_store %arg8[%c0_17, %c0_18], %21 {strides = array<i32>} : memref<8x4xf32, #tpu.memory_space<vmem>>, vector<8x4xf32>,
    return
  }
  func.func @transform_0(%arg0: i32) -> (i32, i32) {
    %c0_i32 = arith.constant 0 : i32
    %c0_i32_0 = arith.constant 0 : i32
    return %arg0, %c0_i32 : i32, i32
  }
  func.func @transform_1(%arg0: i32) -> (i32, i32) {
    %c0_i32 = arith.constant 0 : i32
    %c0_i32_0 = arith.constant 0 : i32
    %c0_i32_1 = arith.constant 0 : i32
    return %c0_i32, %c0_i32_0 : i32, i32
  }
  func.func @transform_2(%arg0: i32) -> (i32, i32) {
    %c0_i32 = arith.constant 0 : i32
    %c0_i32_0 = arith.constant 0 : i32
    %c0_i32_1 = arith.constant 0 : i32
    return %c0_i32, %c0_i32_0 : i32, i32
  }
  func.func @transform_3(%arg0: i32) -> (i32, i32) {
    %c0_i32 = arith.constant 0 : i32
    %c0_i32_0 = arith.constant 0 : i32
    %c0_i32_1 = arith.constant 0 : i32
    return %c0_i32, %c0_i32_0 : i32, i32
  }
  func.func @transform_4(%arg0: i32) -> (i32, i32) {
    %c0_i32 = arith.constant 0 : i32
    %c0_i32_0 = arith.constant 0 : i32
    %c0_i32_1 = arith.constant 0 : i32
    return %c0_i32, %c0_i32_0 : i32, i32
  }
  func.func @transform_5(%arg0: i32) -> (i32, i32) {
    %c0_i32 = arith.constant 0 : i32
    %c0_i32_0 = arith.constant 0 : i32
    %c0_i32_1 = arith.constant 0 : i32
    return %c0_i32, %c0_i32_0 : i32, i32
  }
  func.func @transform_6(%arg0: i32) -> (i32, i32) {
    %c0_i32 = arith.constant 0 : i32
    %c0_i32_0 = arith.constant 0 : i32
    %c0_i32_1 = arith.constant 0 : i32
    return %c0_i32, %c0_i32_0 : i32, i32
  }
  func.func @transform_7(%arg0: i32) -> (i32, i32) {
    %c0_i32 = arith.constant 0 : i32
    %c0_i32_0 = arith.constant 0 : i32
    return %arg0, %c0_i32 : i32, i32
  }
}

</mosaic_0001>

<llo_original>
// kernel: simple_qnetwork_forward.1
$region0: #{simple_qnetwork_forward.1}
  #allocation0 [shape = 'u32[]', space=smem, size = 0x4, offset = 0x4, fixed_abs, tag = 'smem constant byte address 0x4 - core index']
  #allocation1 [shape = 'u32[144,128]{1,0:T(1,128)}', space=vmem, size = 0x12000, scoped, tag = 'internal scratch']
  %s0 = inlined_call_operand.vmem [shape: f32[8,16], index: 0, kind: input, shape index: {}]
  %s1 = inlined_call_operand.vmem [shape: bf16[16,128], index: 1, kind: input, shape index: {}]
  %s2 = inlined_call_operand.vmem [shape: f32[1,128], index: 2, kind: input, shape index: {}]
  %s3 = inlined_call_operand.vmem [shape: bf16[128,128], index: 3, kind: input, shape index: {}]
  %s4 = inlined_call_operand.vmem [shape: f32[1,128], index: 4, kind: input, shape index: {}]
  %s5 = inlined_call_operand.vmem [shape: f32[128,4], index: 5, kind: input, shape index: {}]
  %s6 = inlined_call_operand.vmem [shape: f32[1,4], index: 6, kind: input, shape index: {}]
  %s7 = inlined_call_operand.vmem [shape: f32[8,4], index: 7, kind: output, shape index: {}]
  %s8 = sld [smem:[#allocation0]]
  $region38: #{simple_qnetwork_forward.1} parent=0
    _
  %s10 = ssub.s32 1, %s8
  %s11 = scalar_select 0, %s10, %s8
  // Predicated region
  $region2: #{simple_qnetwork_forward.1} parent=0 // pred_check
    _
  $region3: #{simple_qnetwork_forward.1} parent=0 // pred_check_branch
    %13 = sbr.rel (0) target = $region5
  $region4: #{simple_qnetwork_forward.1} parent=0 // pred_region
    _
  $region5: #{simple_qnetwork_forward.1} parent=0 // pred_fallthru
    _
  // Predicated region
  $region6: #{simple_qnetwork_forward.1} parent=0 // pred_check
    _
  $region7: #{simple_qnetwork_forward.1} parent=0 // pred_check_branch
    %15 = sbr.rel (0) target = $region9
  $region8: #{simple_qnetwork_forward.1} parent=0 // pred_region
    _
  $region9: #{simple_qnetwork_forward.1} parent=0 // pred_fallthru
    _
  // Predicated region
  $region10: #{simple_qnetwork_forward.1} parent=0 // pred_check
    _
  $region11: #{simple_qnetwork_forward.1} parent=0 // pred_check_branch
    %17 = sbr.rel (0) target = $region13
  $region12: #{simple_qnetwork_forward.1} parent=0 // pred_region
    _
  $region13: #{simple_qnetwork_forward.1} parent=0 // pred_fallthru
    _
  // Predicated region
  $region14: #{simple_qnetwork_forward.1} parent=0 // pred_check
    _
  $region15: #{simple_qnetwork_forward.1} parent=0 // pred_check_branch
    %19 = sbr.rel (0) target = $region17
  $region16: #{simple_qnetwork_forward.1} parent=0 // pred_region
    _
  $region17: #{simple_qnetwork_forward.1} parent=0 // pred_fallthru
    _
  // Predicated region
  $region18: #{simple_qnetwork_forward.1} parent=0 // pred_check
    _
  $region19: #{simple_qnetwork_forward.1} parent=0 // pred_check_branch
    %21 = sbr.rel (0) target = $region21
  $region20: #{simple_qnetwork_forward.1} parent=0 // pred_region
    _
  $region21: #{simple_qnetwork_forward.1} parent=0 // pred_fallthru
    _
  // Predicated region
  $region22: #{simple_qnetwork_forward.1} parent=0 // pred_check
    _
  $region23: #{simple_qnetwork_forward.1} parent=0 // pred_check_branch
    %23 = sbr.rel (0) target = $region25
  $region24: #{simple_qnetwork_forward.1} parent=0 // pred_region
    _
  $region25: #{simple_qnetwork_forward.1} parent=0 // pred_fallthru
    _
  // Predicated region
  $region26: #{simple_qnetwork_forward.1} parent=0 // pred_check
    _
  $region27: #{simple_qnetwork_forward.1} parent=0 // pred_check_branch
    %25 = sbr.rel (0) target = $region29
  $region28: #{simple_qnetwork_forward.1} parent=0 // pred_region
    _
  $region29: #{simple_qnetwork_forward.1} parent=0 // pred_fallthru
    _
  %v27 = vld [vmem:[%s0] sm:$0xff]
  %v28 = vpack.c.bf16 %v27, %v27
  %v29 = vld [vmem:[%s1] sm:$0xf]
  %v30 = vld [vmem:[%s1 + $0x4] sm:$0xf]
  %v31 = vld [vmem:[%s2] sm:$0x1]
  %v33 = vlaneseq
  %v34 = vshrl.u32 %v33, 7
  %v35 = vsub.s32 0, %v34
  %v36 = vrot.slane %v31, %v35
  %v40 = vunpack.c.l.b16 %v29
  %v41 = vunpack.c.l.b16 %v30
  %v42 = vpack.c.b16 %v41, %v40
  %vm44 = vcmask 130048
  %v46 = vsel %vm44, %v28, 0
  %48 = vmatprep.subr.bf16.mxu0 0
  %49 = vmatpush1.bf16.msra.mxu0 %v42
  %50 = vmatprep.subr.bf16.mxu0 0
  %51 = vmatpush1.bf16.msra.mxu0 0
  %52 = vmatprep.subr.bf16.mxu0 0
  %53 = vmatpush1.bf16.msra.mxu0 0
  %54 = vmatprep.subr.bf16.mxu0 0
  %55 = vmatpush1.bf16.msra.mxu0 0
  %56 = vmatprep.subr.bf16.mxu0 0
  %57 = vmatpush1.bf16.msra.mxu0 0
  %58 = vmatprep.subr.bf16.mxu0 0
  %59 = vmatpush1.bf16.msra.mxu0 0
  %60 = vmatprep.subr.bf16.mxu0 0
  %61 = vmatpush1.bf16.msra.mxu0 0
  %62 = vmatprep.subr.bf16.mxu0 0
  %63 = vmatpush1.bf16.msra.mxu0 0
  %64 = vmatprep.subr.bf16.mxu0 0
  %65 = vmatpush1.bf16.msra.mxu0 0
  %66 = vmatprep.subr.bf16.mxu0 0
  %67 = vmatpush1.bf16.msra.mxu0 0
  %68 = vmatprep.subr.bf16.mxu0 0
  %69 = vmatpush1.bf16.msra.mxu0 0
  %70 = vmatprep.subr.bf16.mxu0 0
  %71 = vmatpush1.bf16.msra.mxu0 0
  %72 = vmatprep.subr.bf16.mxu0 0
  %73 = vmatpush1.bf16.msra.mxu0 0
  %74 = vmatprep.subr.bf16.mxu0 0
  %75 = vmatpush1.bf16.msra.mxu0 0
  %76 = vmatprep.subr.bf16.mxu0 0
  %77 = vmatpush1.bf16.msra.mxu0 0
  %78 = vmatprep.subr.bf16.mxu0 0
  %79 = vmatpush1.bf16.msra.mxu0 0
  %80 = vmatprep.mubr.bf16.mxu0 0
  %81 = vmatmul.mubr.bf16.gmra.mrb[0].mxu0 %v46
  %v82 = vpop.f32.mrb[0].mxu0
  %v83 = vadd.f32 %v36, %v82
  %v84 = vpop.f32.mrb[0].mxu0
  %v85 = vpop.f32.mrb[0].mxu0
  %v86 = vpop.f32.mrb[0].mxu0
  %87 = vdwg.mxu0
  %v88 = vmax.f32 %v83, 0.0
  %v89 = vpack.c.bf16 %v88, %v88
  %v90 = vld [vmem:[%s3] sm:$0xf]
  %v91 = vld [vmem:[%s3 + $0x4] sm:$0xf]
  %v92 = vld [vmem:[%s3 + $0x8] sm:$0xf]
  %v93 = vld [vmem:[%s3 + $0xc] sm:$0xf]
  %v94 = vld [vmem:[%s3 + $0x10] sm:$0xf]
  %v95 = vld [vmem:[%s3 + $0x14] sm:$0xf]
  %v96 = vld [vmem:[%s3 + $0x18] sm:$0xf]
  %v97 = vld [vmem:[%s3 + $0x1c] sm:$0xf]
  %v98 = vld [vmem:[%s3 + $0x20] sm:$0xf]
  %v99 = vld [vmem:[%s3 + $0x24] sm:$0xf]
  %v100 = vld [vmem:[%s3 + $0x28] sm:$0xf]
  %v101 = vld [vmem:[%s3 + $0x2c] sm:$0xf]
  %v102 = vld [vmem:[%s3 + $0x30] sm:$0xf]
  %v103 = vld [vmem:[%s3 + $0x34] sm:$0xf]
  %v104 = vld [vmem:[%s3 + $0x38] sm:$0xf]
  %v105 = vld [vmem:[%s3 + $0x3c] sm:$0xf]
  %v106 = vld [vmem:[%s4] sm:$0x1]
  %v108 = vlaneseq
  %v109 = vshrl.u32 %v108, 7
  %v110 = vsub.s32 0, %v109
  %v111 = vrot.slane %v106, %v110
  %v129 = vunpack.c.l.b16 %v90
  %v130 = vunpack.c.l.b16 %v91
  %v131 = vunpack.c.l.b16 %v92
  %v132 = vunpack.c.l.b16 %v93
  %v133 = vunpack.c.l.b16 %v94
  %v134 = vunpack.c.l.b16 %v95
  %v135 = vunpack.c.l.b16 %v96
  %v136 = vunpack.c.l.b16 %v97
  %v137 = vunpack.c.l.b16 %v98
  %v138 = vunpack.c.l.b16 %v99
  %v139 = vunpack.c.l.b16 %v100
  %v140 = vunpack.c.l.b16 %v101
  %v141 = vunpack.c.l.b16 %v102
  %v142 = vunpack.c.l.b16 %v103
  %v143 = vunpack.c.l.b16 %v104
  %v144 = vunpack.c.l.b16 %v105
  %v145 = vpack.c.b16 %v130, %v129
  %v146 = vpack.c.b16 %v132, %v131
  %v147 = vpack.c.b16 %v134, %v133
  %v148 = vpack.c.b16 %v136, %v135
  %v149 = vpack.c.b16 %v138, %v137
  %v150 = vpack.c.b16 %v140, %v139
  %v151 = vpack.c.b16 %v142, %v141
  %v152 = vpack.c.b16 %v144, %v143
  %161 = vmatprep.subr.bf16.mxu0 0
  %162 = vmatpush1.bf16.msra.mxu0 %v145
  %163 = vmatprep.subr.bf16.mxu0 0
  %164 = vmatpush1.bf16.msra.mxu0 %v146
  %165 = vmatprep.subr.bf16.mxu0 0
  %166 = vmatpush1.bf16.msra.mxu0 %v147
  %167 = vmatprep.subr.bf16.mxu0 0
  %168 = vmatpush1.bf16.msra.mxu0 %v148
  %169 = vmatprep.subr.bf16.mxu0 0
  %170 = vmatpush1.bf16.msra.mxu0 %v149
  %171 = vmatprep.subr.bf16.mxu0 0
  %172 = vmatpush1.bf16.msra.mxu0 %v150
  %173 = vmatprep.subr.bf16.mxu0 0
  %174 = vmatpush1.bf16.msra.mxu0 %v151
  %175 = vmatprep.subr.bf16.mxu0 0
  %176 = vmatpush1.bf16.msra.mxu0 %v152
  %177 = vmatprep.subr.bf16.mxu0 0
  %178 = vmatpush1.bf16.msra.mxu0 0
  %179 = vmatprep.subr.bf16.mxu0 0
  %180 = vmatpush1.bf16.msra.mxu0 0
  %181 = vmatprep.subr.bf16.mxu0 0
  %182 = vmatpush1.bf16.msra.mxu0 0
  %183 = vmatprep.subr.bf16.mxu0 0
  %184 = vmatpush1.bf16.msra.mxu0 0
  %185 = vmatprep.subr.bf16.mxu0 0
  %186 = vmatpush1.bf16.msra.mxu0 0
  %187 = vmatprep.subr.bf16.mxu0 0
  %188 = vmatpush1.bf16.msra.mxu0 0
  %189 = vmatprep.subr.bf16.mxu0 0
  %190 = vmatpush1.bf16.msra.mxu0 0
  %191 = vmatprep.subr.bf16.mxu0 0
  %192 = vmatpush1.bf16.msra.mxu0 0
  %193 = vmatprep.mubr.bf16.mxu0 0
  %194 = vmatmul.mubr.bf16.gmra.mrb[0].mxu0 %v89
  %v195 = vpop.f32.mrb[0].mxu0
  %v196 = vadd.f32 %v111, %v195
  %v197 = vpop.f32.mrb[0].mxu0
  %v198 = vpop.f32.mrb[0].mxu0
  %v199 = vpop.f32.mrb[0].mxu0
  %200 = vdwg.mxu0
  %v201 = vmax.f32 %v196, 0.0
  %v202 = vld [vmem:[%s5] sm:$0xff]
  %v203 = vld [vmem:[%s5 + $0x8] sm:$0xff]
  %v204 = vld [vmem:[%s5 + $0x10] sm:$0xff]
  %v205 = vld [vmem:[%s5 + $0x18] sm:$0xff]
  %v206 = vld [vmem:[%s5 + $0x20] sm:$0xff]
  %v207 = vld [vmem:[%s5 + $0x28] sm:$0xff]
  %v208 = vld [vmem:[%s5 + $0x30] sm:$0xff]
  %v209 = vld [vmem:[%s5 + $0x38] sm:$0xff]
  %v210 = vld [vmem:[%s5 + $0x40] sm:$0xff]
  %v211 = vld [vmem:[%s5 + $0x48] sm:$0xff]
  %v212 = vld [vmem:[%s5 + $0x50] sm:$0xff]
  %v213 = vld [vmem:[%s5 + $0x58] sm:$0xff]
  %v214 = vld [vmem:[%s5 + $0x60] sm:$0xff]
  %v215 = vld [vmem:[%s5 + $0x68] sm:$0xff]
  %v216 = vld [vmem:[%s5 + $0x70] sm:$0xff]
  %v217 = vld [vmem:[%s5 + $0x78] sm:$0xff]
  %v218 = vld [vmem:[%s6] sm:$0x1]
  %v220 = vlaneseq
  %v221 = vshrl.u32 %v220, 7
  %v222 = vsub.s32 0, %v221
  %v223 = vrot.slane %v218, %v222
  %225 = vmatprep.subr.mxu0 0.0
  %226 = vmatpush1.msra.mxu0 %v202
  %227 = vmatprep.subr.mxu0 0.0
  %228 = vmatpush1.msra.mxu0 %v203
  %229 = vmatprep.subr.mxu0 0.0
  %230 = vmatpush1.msra.mxu0 %v204
  %231 = vmatprep.subr.mxu0 0.0
  %232 = vmatpush1.msra.mxu0 %v205
  %233 = vmatprep.subr.mxu0 0.0
  %234 = vmatpush1.msra.mxu0 %v206
  %235 = vmatprep.subr.mxu0 0.0
  %236 = vmatpush1.msra.mxu0 %v207
  %237 = vmatprep.subr.mxu0 0.0
  %238 = vmatpush1.msra.mxu0 %v208
  %239 = vmatprep.subr.mxu0 0.0
  %240 = vmatpush1.msra.mxu0 %v209
  %241 = vmatprep.subr.mxu0 0.0
  %242 = vmatpush1.msra.mxu0 %v210
  %243 = vmatprep.subr.mxu0 0.0
  %244 = vmatpush1.msra.mxu0 %v211
  %245 = vmatprep.subr.mxu0 0.0
  %246 = vmatpush1.msra.mxu0 %v212
  %247 = vmatprep.subr.mxu0 0.0
  %248 = vmatpush1.msra.mxu0 %v213
  %249 = vmatprep.subr.mxu0 0.0
  %250 = vmatpush1.msra.mxu0 %v214
  %251 = vmatprep.subr.mxu0 0.0
  %252 = vmatpush1.msra.mxu0 %v215
  %253 = vmatprep.subr.mxu0 0.0
  %254 = vmatpush1.msra.mxu0 %v216
  %255 = vmatprep.subr.mxu0 0.0
  %256 = vmatpush1.msra.mxu0 %v217
  %257 = vmatprep.subr.mxu0 0.0
  %258 = vmatpush1.msra.mxu0 0.0
  %259 = vmatprep.subr.mxu0 0.0
  %260 = vmatpush1.msra.mxu0 0.0
  %261 = vmatprep.subr.mxu0 0.0
  %262 = vmatpush1.msra.mxu0 0.0
  %263 = vmatprep.subr.mxu0 0.0
  %264 = vmatpush1.msra.mxu0 0.0
  %265 = vmatprep.subr.mxu0 0.0
  %266 = vmatpush1.msra.mxu0 0.0
  %267 = vmatprep.subr.mxu0 0.0
  %268 = vmatpush1.msra.mxu0 0.0
  %269 = vmatprep.subr.mxu0 0.0
  %270 = vmatpush1.msra.mxu0 0.0
  %271 = vmatprep.subr.mxu0 0.0
  %272 = vmatpush1.msra.mxu0 0.0
  %273 = vmatprep.subr.mxu0 0.0
  %274 = vmatpush1.msra.mxu0 0.0
  %275 = vmatprep.subr.mxu0 0.0
  %276 = vmatpush1.msra.mxu0 0.0
  %277 = vmatprep.subr.mxu0 0.0
  %278 = vmatpush1.msra.mxu0 0.0
  %279 = vmatprep.subr.mxu0 0.0
  %280 = vmatpush1.msra.mxu0 0.0
  %281 = vmatprep.subr.mxu0 0.0
  %282 = vmatpush1.msra.mxu0 0.0
  %283 = vmatprep.subr.mxu0 0.0
  %284 = vmatpush1.msra.mxu0 0.0
  %285 = vmatprep.subr.mxu0 0.0
  %286 = vmatpush1.msra.mxu0 0.0
  %287 = vmatprep.subr.mxu0 0.0
  %288 = vmatpush1.msra.mxu0 0.0
  %289 = vmatprep.mubr.f32.mxu0 0.0
  %290 = vmatmul.mubr.f32.gmra.mrb[0].mxu0 %v201
  %v291 = vpop.f32.mrb[0].mxu0
  %v292 = vadd.f32 %v223, %v291
  %v293 = vpop.f32.mrb[0].mxu0
  %294 = vdwg.mxu0
  %vm295 = vcmask 31744
  %296 = vst.msk [vmem:[%s7] sm:$0xff] %vm295, %v292
  // Predicated region
  $region30: #{simple_qnetwork_forward.1} parent=0 // pred_check
    _
  $region31: #{simple_qnetwork_forward.1} parent=0 // pred_check_branch
    %298 = sbr.rel (0) target = $region33
  $region32: #{simple_qnetwork_forward.1} parent=0 // pred_region
    _
  $region33: #{simple_qnetwork_forward.1} parent=0 // pred_fallthru
    _
  // Predicated region
  $region34: #{simple_qnetwork_forward.1} parent=0 // pred_check
    _
  $region35: #{simple_qnetwork_forward.1} parent=0 // pred_check_branch
    %300 = sbr.rel (0) target = $region37
  $region36: #{simple_qnetwork_forward.1} parent=0 // pred_region
    _
  $region37: #{simple_qnetwork_forward.1} parent=0 // pred_fallthru
    _

</llo_original>
